<compile_context>
chip_gen: v5e
topology: v5e:2x2
jax: 0.10.0
libtpu: 0.0.40
codegen_flags: <defaults>
</compile_context>

<pallas_src>
import functools

import jax
import jax.numpy as jnp
from jax import lax
from jax.experimental import pallas as pl
from jax.experimental.pallas import tpu as pltpu

_LANES = 128
_SUBLANES = 8
_MIB = 1024 * 1024


# --------------------------------------------------------------------------
# VMEM / tiling helpers (generation- and padding-aware).
# --------------------------------------------------------------------------
def _round_up(x, m):
    return -(-x // m) * m


def _tile_bytes(rows, cols, dtype):
    """VMEM footprint of a (rows, cols) tile including (sublane, lane) padding."""
    dt = jnp.dtype(dtype)
    sub = {4: 8, 2: 16, 1: 32}.get(dt.itemsize, 8)
    return _round_up(max(int(rows), 1), sub) * _round_up(max(int(cols), 1), _LANES) * dt.itemsize


def _vmem_capacity_bytes():
    try:
        info = pltpu.get_tpu_info()
        cap = getattr(info, "vmem_capacity_bytes", None)
        if cap:
            return int(cap)
    except Exception:
        pass
    return 64 * _MIB                     # conservative (v7x-sized) fallback


def _vmem_limit_cap():
    # Leave headroom under physical VMEM: ~48 MiB on v7x (64 MiB physical),
    # ~100 MiB on v5e/v6e (128 MiB physical).
    return 48 * _MIB if _vmem_capacity_bytes() <= 96 * _MIB else 100 * _MIB


def _clamp_vmem(n_bytes):
    return int(min(max(n_bytes, 32 * _MIB), _vmem_limit_cap()))


def _pick_divisor_tile(n, cap, prefer_multi=False):
    """Largest divisor of n that is a multiple of 8 and <= cap (else n)."""
    cands = [t for t in range(8, min(n, cap) + 1, 8) if n % t == 0]
    if prefer_multi and n >= 16:
        multi = [t for t in cands if t <= n // 2]
        if multi:
            return max(multi)
    return max(cands) if cands else n


def _pick_norm_tile(n, d, in_dtype, out_dtype):
    cands = [t for t in range(8, min(n, 2048) + 1, 8) if n % t == 0]

    def bytes_for(t):
        return (2 * _tile_bytes(t, d, in_dtype) + 2 * _tile_bytes(t, d, out_dtype)
                + 2 * _tile_bytes(t, d, jnp.float32))

    fit = [t for t in cands if bytes_for(t) <= 24 * _MIB]
    if fit:
        return max(fit)
    return min(cands) if cands else n


def _pick_chunk_rows(b, m, d, in_dtype, budget, row_target=512):
    """Rows per grid step (multiple of m): MXU-sized, VMEM-bounded, >=2 steps if possible."""
    valid = []
    for g in range(1, b + 1):
        if b % g:
            continue
        r = g * m
        if r % _SUBLANES != 0 and g != b:     # block rows must be 8-aligned unless full
            continue
        need = (2 * 2 * _tile_bytes(r, d, in_dtype)
                + 2 * _tile_bytes(r, d, jnp.float32)
                + 3 * _tile_bytes(r, r, jnp.float32)
                + 2 * _MIB)
        if need > budget:
            continue
        valid.append(g)
    if not valid:
        # TODO(synk): column-stream the chunked similarity for very large m.
        return m if m % _SUBLANES == 0 else b * m
    if b >= 2:
        multi = [g for g in valid if g < b]   # keep >=2 grid steps (v7x megacore)
        if multi:
            valid = multi
    under = [g for g in valid if g * m <= row_target]
    g = max(under) if under else min(valid)
    return g * m


def _pick_col_tile(n, d, tm, in_dtype, budget, cap=2048):
    cands = sorted({t for t in range(8, min(n, cap) + 1, 8) if n % t == 0} | {n})
    fixed = (4 * _tile_bytes(tm, d, in_dtype)
             + 2 * _tile_bytes(tm, d, jnp.float32)
             + _tile_bytes(tm, 1, jnp.float32) + 2 * _MIB)
    fit = [t for t in cands
           if fixed + 2 * _tile_bytes(t, d, in_dtype)
           + 3 * _tile_bytes(tm, t, jnp.float32) <= budget]
    return max(fit) if fit else min(cands)


# --------------------------------------------------------------------------
# Prologue kernel: L2-normalize rows once, emit matmul-dtype rows (bf16).
# --------------------------------------------------------------------------
def _normalize_rows_kernel(x_ref, o_ref, *, eps):
    x = x_ref[...].astype(jnp.float32)
    sumsq = jnp.sum(x * x, axis=-1, keepdims=True)
    o_ref[...] = (x * lax.rsqrt(jnp.maximum(sumsq, jnp.float32(eps * eps)))).astype(o_ref.dtype)


def _normalize_rows(x, out_dtype, eps=1e-12):
    n, d = x.shape
    t = _pick_norm_tile(n, d, x.dtype, out_dtype)
    vmem = _clamp_vmem(2 * _tile_bytes(t, d, x.dtype) + 2 * _tile_bytes(t, d, out_dtype)
                       + 2 * _tile_bytes(t, d, jnp.float32) + 2 * _MIB)
    return pl.pallas_call(
        functools.partial(_normalize_rows_kernel, eps=eps),
        out_shape=jax.ShapeDtypeStruct((n, d), out_dtype),
        grid=(n // t,),
        in_specs=[pl.BlockSpec((t, d), lambda i: (i, 0))],
        out_specs=pl.BlockSpec((t, d), lambda i: (i, 0)),
        compiler_params=pltpu.CompilerParams(
            dimension_semantics=("parallel",), vmem_limit_bytes=vmem),
    )(x)


# --------------------------------------------------------------------------
# Kernel 1: negative_samples path -- G contiguous chunks flattened into one
# (R, d) x (d, R) MXU matmul with a block-diagonal mask on the denominator.
# --------------------------------------------------------------------------
def _chunked_infonce_kernel(h1_ref, h2_ref, o_ref, *, m, tau):
    h1 = h1_ref[...]                                   # (R, d) pre-normalized rows
    h2 = h2_ref[...]                                   # (R, d)
    inv_tau = jnp.float32(1.0 / tau)
    r = h1.shape[0]

    # Positive term: cosine of aligned rows (f32 accumulate, VPU lane reduce).
    diag = jnp.sum(h1.astype(jnp.float32) * h2.astype(jnp.float32),
                   axis=-1, keepdims=True)             # (R, 1)

    # One MXU-shaped matmul for all G = R/m chunks at once (f32 accumulate).
    dot = lax.dot_general(h1, h2, dimension_numbers=(((1,), (1,)), ((), ())),
                          preferred_element_type=jnp.float32)          # (R, R)

    # cosine <= 1  =>  exp((dot - 1)/tau) <= ~1: constant-shift LSE, no row-max.
    p = jnp.exp((dot - 1.0) * inv_tau)
    if r > m:
        # Mask cross-chunk entries out of the denominator (block-diagonal mask).
        rc = lax.broadcasted_iota(jnp.int32, (r, 1), 0) // m
        cc = lax.broadcasted_iota(jnp.int32, (1, r), 1) // m
        p = jnp.where(rc == cc, p, 0.0)
    denom = jnp.sum(p, axis=-1, keepdims=True)         # (R, 1)

    # per-row InfoNCE: lse - sim_ii/tau == log(denom) + (1 - diag)/tau
    loss_rows = jnp.log(denom) + (1.0 - diag) * inv_tau
    o_ref[...] = jnp.full(o_ref.shape, jnp.sum(loss_rows), dtype=jnp.float32)


# --------------------------------------------------------------------------
# Kernel 2: negative_samples=None path -- row tiles x streamed column tiles
# with an online (constant-shift) log-sum-exp accumulator.
# --------------------------------------------------------------------------
def _streamed_infonce_kernel(h1_ref, h2pos_ref, h2col_ref, o_ref, denom_sc, *, tau):
    j = pl.program_id(1)
    inv_tau = jnp.float32(1.0 / tau)

    @pl.when(j == 0)
    def _():
        denom_sc[...] = jnp.zeros_like(denom_sc)

    dot = lax.dot_general(h1_ref[...], h2col_ref[...],
                          dimension_numbers=(((1,), (1,)), ((), ())),
                          preferred_element_type=jnp.float32)          # (TM, TN)
    denom_sc[...] += jnp.sum(jnp.exp((dot - 1.0) * inv_tau), axis=-1, keepdims=True)

    @pl.when(j == pl.num_programs(1) - 1)
    def _():
        diag = jnp.sum(h1_ref[...].astype(jnp.float32) * h2pos_ref[...].astype(jnp.float32),
                       axis=-1, keepdims=True)                          # (TM, 1)
        loss_rows = jnp.log(denom_sc[...]) + (1.0 - diag) * inv_tau
        o_ref[...] = jnp.full(o_ref.shape, jnp.sum(loss_rows), dtype=jnp.float32)


# --------------------------------------------------------------------------
# Wrappers.
# --------------------------------------------------------------------------
def _l2l_chunked(h1n, h2n, negative_samples, tau):
    n, d = h1n.shape
    m = negative_samples
    # TODO(synk): ragged chunks (n % m != 0, PyTorch pad_sequence path) are not implemented.
    assert n % m == 0, "N must be divisible by negative_samples"
    b = n // m

    budget = _vmem_limit_cap() - 8 * _MIB
    r = _pick_chunk_rows(b, m, d, h1n.dtype, budget)
    steps = n // r

    vmem = _clamp_vmem(
        2 * 2 * _tile_bytes(r, d, h1n.dtype)       # two inputs, double buffered
        + 2 * _tile_bytes(r, d, jnp.float32)       # f32 upcasts for the diag term
        + 3 * _tile_bytes(r, r, jnp.float32)       # dot / exp / mask temporaries
        + 4 * _tile_bytes(r, 1, jnp.float32)
        + 2 * _tile_bytes(_SUBLANES, _LANES, jnp.float32)
        + 2 * _MIB)

    partials = pl.pallas_call(
        functools.partial(_chunked_infonce_kernel, m=m, tau=float(tau)),
        out_shape=jax.ShapeDtypeStruct((steps, _SUBLANES, _LANES), jnp.float32),
        grid=(steps,),
        in_specs=[pl.BlockSpec((r, d), lambda i: (i, 0)),
                  pl.BlockSpec((r, d), lambda i: (i, 0))],
        out_specs=pl.BlockSpec((1, _SUBLANES, _LANES), lambda i: (i, 0, 0)),
        compiler_params=pltpu.CompilerParams(
            dimension_semantics=("parallel",), vmem_limit_bytes=vmem),
    )(h1n, h2n)

    # Equal-size chunks: mean over chunk-means == mean over all N rows.
    return jnp.sum(partials[:, 0, 0]) / jnp.float32(n)


def _l2l_full(h1n, h2n, tau):
    n, d = h1n.shape
    budget = _vmem_limit_cap() - 8 * _MIB
    small_vmem = _vmem_capacity_bytes() <= 96 * _MIB
    tm = _pick_divisor_tile(n, cap=512 if small_vmem else 1024, prefer_multi=True)
    tn = _pick_col_tile(n, d, tm, h1n.dtype, budget)
    row_steps, col_steps = n // tm, n // tn

    vmem = _clamp_vmem(
        2 * _tile_bytes(tm, d, h1n.dtype)          # query rows (change with i only)
        + 2 * _tile_bytes(tm, d, h1n.dtype)        # aligned positive rows
        + 2 * _tile_bytes(tn, d, h1n.dtype)        # streamed negative columns
        + 2 * _tile_bytes(tm, d, jnp.float32)      # f32 upcasts for the diag term
        + 3 * _tile_bytes(tm, tn, jnp.float32)     # dot / exp temporaries
        + _tile_bytes(tm, 1, jnp.float32)          # denom scratch
        + 2 * _tile_bytes(_SUBLANES, _LANES, jnp.float32)
        + 2 * _MIB)

    partials = pl.pallas_call(
        functools.partial(_streamed_infonce_kernel, tau=float(tau)),
        out_shape=jax.ShapeDtypeStruct((row_steps, _SUBLANES, _LANES), jnp.float32),
        grid=(row_steps, col_steps),
        in_specs=[pl.BlockSpec((tm, d), lambda i, j: (i, 0)),    # query rows
                  pl.BlockSpec((tm, d), lambda i, j: (i, 0)),    # aligned positives
                  pl.BlockSpec((tn, d), lambda i, j: (j, 0))],   # streamed negatives
        out_specs=pl.BlockSpec((1, _SUBLANES, _LANES), lambda i, j: (i, 0, 0)),
        scratch_shapes=[pltpu.VMEM((tm, 1), jnp.float32)],
        compiler_params=pltpu.CompilerParams(
            dimension_semantics=("parallel", "arbitrary"), vmem_limit_bytes=vmem),
    )(h1n, h2n, h2n)

    return jnp.sum(partials[:, 0, 0]) / jnp.float32(n)


def dual_branch_contrast_l2l(h1, h2, negative_samples=None, tau=0.2,
                             matmul_dtype=jnp.bfloat16):
    """Pallas implementation of DualBranchContrast(mode='L2L').forward (InfoNCE)."""
    # Prologue: normalize rows once, store in the matmul dtype (bf16 default):
    # halves DMA bytes and removes any per-step re-normalization of h2.
    h1n = _normalize_rows(h1, matmul_dtype)
    h2n = _normalize_rows(h2, matmul_dtype)
    if negative_samples is None:
        return _l2l_full(h1n, h2n, tau)
    return _l2l_chunked(h1n, h2n, negative_samples, tau)


# --------------------------------------------------------------------------
# Pure-JAX references (module semantics, f32) for validation.
# --------------------------------------------------------------------------
def _reference_chunked(h1, h2, negative_samples, tau=0.2):
    n, d = h1.shape
    b = n // negative_samples
    m = negative_samples
    h1b = h1.reshape(b, m, d).astype(jnp.float32)
    h2b = h2.reshape(b, m, d).astype(jnp.float32)

    def one(a, s):
        an = a / jnp.maximum(jnp.linalg.norm(a, axis=-1, keepdims=True), 1e-12)
        sn = s / jnp.maximum(jnp.linalg.norm(s, axis=-1, keepdims=True), 1e-12)
        sim = (an @ sn.T) / tau
        log_prob = sim - jax.scipy.special.logsumexp(sim, axis=1, keepdims=True)
        return -jnp.mean(jnp.diagonal(log_prob))

    return jnp.mean(jax.vmap(one)(h1b, h2b))


def _reference_full(h1, h2, tau=0.2):
    an = h1 / jnp.maximum(jnp.linalg.norm(h1, axis=-1, keepdims=True), 1e-12)
    sn = h2 / jnp.maximum(jnp.linalg.norm(h2, axis=-1, keepdims=True), 1e-12)
    sim = (an @ sn.T) / tau
    log_prob = sim - jax.scipy.special.logsumexp(sim, axis=1, keepdims=True)
    return -jnp.mean(jnp.diagonal(log_prob))


if __name__ == "__main__":
    key = jax.random.PRNGKey(0)
    k1, k2, k3, k4 = jax.random.split(key, 4)

    # Chunked path: 16 node embeddings, hidden dim 32, negative_samples=8 -> 2 chunks.
    N, D, NEG, TAU = 16, 32, 8, 0.2
    h1 = jax.random.normal(k1, (N, D), dtype=jnp.float32)
    h2 = jax.random.normal(k2, (N, D), dtype=jnp.float32)

    loss_f32 = dual_branch_contrast_l2l(h1, h2, negative_samples=NEG, tau=TAU,
                                        matmul_dtype=jnp.float32)
    loss_bf16 = dual_branch_contrast_l2l(h1, h2, negative_samples=NEG, tau=TAU)
    loss_f32, loss_bf16 = jax.block_until_ready((loss_f32, loss_bf16))

    ref = _reference_chunked(h1, h2, NEG, tau=TAU)
    assert jnp.allclose(loss_f32, ref, atol=1e-4, rtol=1e-4), (loss_f32, ref)
    assert jnp.allclose(loss_bf16, ref, atol=3e-2, rtol=3e-2), (loss_bf16, ref)

    # negative_samples=None path: 32 rows -> 2 row tiles of 16, 1 column tile.
    N2 = 32
    g1 = jax.random.normal(k3, (N2, D), dtype=jnp.float32)
    g2 = jax.random.normal(k4, (N2, D), dtype=jnp.float32)
    loss_full_f32 = dual_branch_contrast_l2l(g1, g2, negative_samples=None, tau=TAU,
                                             matmul_dtype=jnp.float32)
    loss_full_bf16 = dual_branch_contrast_l2l(g1, g2, negative_samples=None, tau=TAU)
    loss_full_f32, loss_full_bf16 = jax.block_until_ready((loss_full_f32, loss_full_bf16))
    ref_full = _reference_full(g1, g2, tau=TAU)
    assert jnp.allclose(loss_full_f32, ref_full, atol=1e-4, rtol=1e-4), (loss_full_f32, ref_full)
    assert jnp.allclose(loss_full_bf16, ref_full, atol=3e-2, rtol=3e-2), (loss_full_bf16, ref_full)

    print("KERNEL_OK")
</pallas_src>

<mosaic_0001>
module attributes {stable_mosaic.version = 11 : i64} {
  func.func @_normalize_rows_kernel(%arg0: i32, %arg1: memref<16x32xf32, #tpu.memory_space<vmem>>, %arg2: memref<16x32xf32, #tpu.memory_space<vmem>>) attributes {dimension_semantics = [#tpu.dimension_semantics<parallel>], iteration_bounds = array<i64: 1>, scalar_prefetch = 0 : i64, scratch_operands = 0 : i64, tpu.core_type = #tpu.core_type<tc>, window_params = [{transform_indices = @transform_0, window_bounds = array<i64: 16, 32>}, {transform_indices = @transform_1, window_bounds = array<i64: 16, 32>}]} {
    %c0 = arith.constant 0 : index
    %c0_0 = arith.constant 0 : index
    %0 = vector.load %arg1[%c0, %c0_0] : memref<16x32xf32, #tpu.memory_space<vmem>>, vector<16x32xf32>
    %1 = arith.mulf %0, %0 : vector<16x32xf32>
    %cst = arith.constant dense<0.000000e+00> : vector<16xf32>
    %2 = vector.multi_reduction <add>, %1, %cst [1] : vector<16x32xf32> to vector<16xf32>
    %3 = vector.shape_cast %2 : vector<16xf32> to vector<16x1xf32>
    %cst_1 = arith.constant 1.000000e-24 : f32
    %4 = vector.broadcast %cst_1 : f32 to vector<16x1xf32>
    %5 = arith.maximumf %3, %4 : vector<16x1xf32>
    %6 = math.rsqrt %5 : vector<16x1xf32>
    %7 = vector.broadcast %6 : vector<16x1xf32> to vector<16x32xf32>
    %8 = arith.mulf %0, %7 : vector<16x32xf32>
    %c0_2 = arith.constant 0 : index
    %c0_3 = arith.constant 0 : index
    %9 = vector.load %arg2[%c0_2, %c0_3] : memref<16x32xf32, #tpu.memory_space<vmem>>, vector<16x32xf32>
    tpu.vector_store %arg2[%c0_2, %c0_3], %8 {strides = array<i32>} : memref<16x32xf32, #tpu.memory_space<vmem>>, vector<16x32xf32>,
    return
  }
  func.func @transform_0(%arg0: i32) -> (i32, i32) {
    %c0_i32 = arith.constant 0 : i32
    %c0_i32_0 = arith.constant 0 : i32
    return %arg0, %c0_i32 : i32, i32
  }
  func.func @transform_1(%arg0: i32) -> (i32, i32) {
    %c0_i32 = arith.constant 0 : i32
    %c0_i32_0 = arith.constant 0 : i32
    return %arg0, %c0_i32 : i32, i32
  }
}

</mosaic_0001>

<llo_original>
// kernel: tpu_custom_call.1
$region0: #{tpu_custom_call.1}
  #allocation0 [shape = 'u32[]', space=smem, size = 0x4, offset = 0x4, fixed_abs, tag = 'smem constant byte address 0x4 - core index']
  #allocation1 [shape = 'u32[72,128]{1,0:T(1,128)}', space=vmem, size = 0x9000, scoped, tag = 'internal scratch']
  %s0 = inlined_call_operand.hbm [shape: f32[16,32], index: 0, kind: input, shape index: {}]
  %s1 = inlined_call_operand.hbm [shape: f32[16,32], index: 1, kind: output, shape index: {}]
  %s2 = sld [smem:[#allocation0]]
  $region18: #{tpu_custom_call.1} parent=0
    _
  %s4 = ssub.s32 1, %s2
  %s5 = scalar_select 0, %s4, %s2
  $region1: #{tpu_custom_call.1} parent=0
    #allocation2 [shape = 'u8[8192]{0}', space=vmem, size = 0x2000, scoped, tag = 'input window, operand 0, single buffered']
    #allocation3 [shape = 's32[1]{0}', space=sflag, size = 0x4, scoped, tag = 'scoped memory for tpu_custom_call.1']
    #allocation4 [shape = 's32[1]{0}', space=sflag, size = 0x4, scoped, tag = 'scoped memory for tpu_custom_call.1']
    #allocation5 [shape = 'u8[8192]{0}', space=vmem, size = 0x2000, scoped, tag = 'output window, operand 0, single buffered']
    %6 = vsyncpa [#allocation3], 0
    %7 = vsyncpa [#allocation4], 0
    // Predicated region
    $region2: #{tpu_custom_call.1} parent=1 // pred_check
      _
    $region3: #{tpu_custom_call.1} parent=1 // pred_check_branch
      %9 = sbr.rel (0) target = $region5
    $region4: #{tpu_custom_call.1} parent=1 // pred_region
      %11 = vsyncadd [#allocation3], 0
      %s12 = sshll.u32 %s0, 4
      %s13 = int_to_ptr.hbm [resolvable:$true] %s12
      %s14 = sshll.u32 [#allocation2], 4
      %s15 = int_to_ptr.vmem [resolvable:$true] %s14
      %20 = dma.hbm_to_vmem [thread:$0]  %s13, 256, %s15, [#allocation3], 128, 128, 8
    $region5: #{tpu_custom_call.1} parent=1 // pred_fallthru
      _
    // Predicated region
    $region6: #{tpu_custom_call.1} parent=1 // pred_check
      _
    $region7: #{tpu_custom_call.1} parent=1 // pred_check_branch
      %22 = sbr.rel (0) target = $region9
    $region8: #{tpu_custom_call.1} parent=1 // pred_region
      %24 = dma.done [#allocation3], 256
    $region9: #{tpu_custom_call.1} parent=1 // pred_fallthru
      _
    %v25 = vld [vmem:[#allocation2] sm:$0xff]
    %v26 = vld [vmem:[#allocation2 + $0x8] sm:$0xff]
    %v27 = vmul.f32 %v25, %v25
    %v28 = vmul.f32 %v26, %v26
    %vm29 = vcmask 261120
    %v30 = vsel %vm29, %v27, 0.0
    %31 = vadd.xlane.f32.xlu0 %v30
    %v32 = vpop.xlane.xlu0 %31
    %v33 = vsel %vm29, %v28, 0.0
    %34 = vadd.xlane.f32.xlu0 %v33
    %v35 = vpop.xlane.xlu0 %34
    %v36 = vmax.f32 %v32, 1e-24
    %v37 = vmax.f32 %v35, 1e-24
    %v38 = vrsqrt.pop %v36
    %v39 = vmul.f32 %v38, %v36
    %v40 = vmul.f32 %v39, %v38
    %v41 = vmul.f32 0.5, %v40
    %v42 = vsub.f32 1.5, %v41
    %v43 = vmul.f32 %v38, %v42
    %vm44 = vweird.f32 %v36
    %vm45 = vweird.f32 %v38
    %vm46 = vmor %vm44, %vm45
    %v47 = vsel %vm46, %v38, %v43
    %v48 = vrsqrt.pop %v37
    %v49 = vmul.f32 %v48, %v37
    %v50 = vmul.f32 %v49, %v48
    %v51 = vmul.f32 0.5, %v50
    %v52 = vsub.f32 1.5, %v51
    %v53 = vmul.f32 %v48, %v52
    %vm54 = vweird.f32 %v37
    %vm55 = vweird.f32 %v48
    %vm56 = vmor %vm54, %vm55
    %v57 = vsel %vm56, %v48, %v53
    %v58 = vmul.f32 %v25, %v47
    %v59 = vmul.f32 %v26, %v57
    %60 = vst.msk [vmem:[#allocation5] sm:$0xff] %vm29, %v58
    %61 = vst.msk [vmem:[#allocation5 + $0x8] sm:$0xff] %vm29, %v59
    // Predicated region
    $region10: #{tpu_custom_call.1} parent=1 // pred_check
      _
    $region11: #{tpu_custom_call.1} parent=1 // pred_check_branch
      %63 = sbr.rel (0) target = $region13
    $region12: #{tpu_custom_call.1} parent=1 // pred_region
      %65 = vsyncadd [#allocation4], 0
      %s66 = sshll.u32 [#allocation5], 4
      %s67 = int_to_ptr.vmem [resolvable:$true] %s66
      %s68 = sshll.u32 %s1, 4
      %s69 = int_to_ptr.hbm [resolvable:$true] %s68
      %74 = dma.vmem_to_hbm [thread:$0]  %s67, 256, %s69, [#allocation4], 128, 128, 8
    $region13: #{tpu_custom_call.1} parent=1 // pred_fallthru
      _
    // Predicated region
    $region14: #{tpu_custom_call.1} parent=1 // pred_check
      _
    $region15: #{tpu_custom_call.1} parent=1 // pred_check_branch
      %76 = sbr.rel (0) target = $region17
    $region16: #{tpu_custom_call.1} parent=1 // pred_region
      %78 = dma.done [#allocation4], 256
    $region17: #{tpu_custom_call.1} parent=1 // pred_fallthru
      _
    %79 = vsyncpa [#allocation3], 1
    %80 = vsyncpa [#allocation4], 1

</llo_original>
